<compile_context>
chip_gen: v5e
topology: v5e:2x2
jax: 0.10.0
libtpu: 0.0.40
codegen_flags: <defaults>
</compile_context>

<pallas_src>
import functools

import jax
import jax.numpy as jnp
from jax.experimental import pallas as pl
from jax.experimental.pallas import tpu as pltpu

_LANE = 128


def _round_up(x, m):
    return ((x + m - 1) // m) * m


def _physical_vmem_bytes():
    """Per-core VMEM capacity; conservative 64 MiB fallback (v7x per-TC)."""
    try:
        return int(pltpu.get_tpu_info().vmem_capacity_bytes)
    except Exception:
        return 64 * 1024 * 1024


def _vmem_limit(footprint, physical):
    """Footprint + compiler-scratch headroom, capped below physical VMEM."""
    return int(min(physical * 0.85, max(footprint + (16 << 20), 32 << 20)))


# ---------------------------------------------------------------------------
# Kernels
# ---------------------------------------------------------------------------
def _mlp_kernel_resident(x_ref, w1_ref, b1_ref, w2_ref, b2_ref, o_ref):
    """Whole hidden dim resident in VMEM: fused fc1 -> ReLU -> fc2 per row tile."""
    h = jnp.dot(x_ref[...], w1_ref[...], preferred_element_type=jnp.float32)
    h = jnp.maximum(h + b1_ref[...], 0.0)
    y = jnp.dot(h.astype(w2_ref.dtype), w2_ref[...],
                preferred_element_type=jnp.float32) + b2_ref[...]
    o_ref[...] = y.astype(o_ref.dtype)
    # TODO(synk): non-zero dropout (training mode) would need pltpu.prng_seed /
    # pltpu.prng_random_bits masking; with drop=0.0 (module default) it's a no-op.


def _mlp_kernel_kstream_accout(x_ref, w1_ref, b1_ref, w2_ref, b2_ref, o_ref):
    """Hidden-dim streamed; the f32 output block doubles as the accumulator."""
    k = pl.program_id(1)

    @pl.when(k == 0)
    def _():
        o_ref[...] = jnp.zeros_like(o_ref)

    h = jnp.dot(x_ref[...], w1_ref[...], preferred_element_type=jnp.float32)
    h = jnp.maximum(h + b1_ref[...], 0.0)
    o_ref[...] += jnp.dot(h.astype(w2_ref.dtype), w2_ref[...],
                          preferred_element_type=jnp.float32)

    @pl.when(k == pl.num_programs(1) - 1)
    def _():
        o_ref[...] += b2_ref[...]


def _mlp_kernel_kstream_scratch(x_ref, w1_ref, b1_ref, w2_ref, b2_ref, o_ref,
                                acc_ref):
    """Hidden-dim streamed; separate f32 scratch accumulator (non-f32 outputs)."""
    k = pl.program_id(1)

    @pl.when(k == 0)
    def _():
        acc_ref[...] = jnp.zeros_like(acc_ref)

    h = jnp.dot(x_ref[...], w1_ref[...], preferred_element_type=jnp.float32)
    h = jnp.maximum(h + b1_ref[...], 0.0)
    acc_ref[...] += jnp.dot(h.astype(w2_ref.dtype), w2_ref[...],
                            preferred_element_type=jnp.float32)

    @pl.when(k == pl.num_programs(1) - 1)
    def _():
        o_ref[...] = (acc_ref[...] + b2_ref[...]).astype(o_ref.dtype)


# ---------------------------------------------------------------------------
# One-time parameter preparation (hoisted out of the forward path)
# ---------------------------------------------------------------------------
def prepare_mlp_params(w1, b1, w2, b2, *, weight_dtype=jnp.bfloat16):
    """Pad feature dims to multiples of 128 (lane-dense) and cast weights once.

    Returns (w1p, b1p, w2p, b2p) to be passed directly to mlp_forward.
    NOTE: the forward math intentionally uses bf16 MXU operands with f32
    accumulation; results differ from a pure-f32 torch module by bf16
    quantization (a documented choice, change weight_dtype if undesired).
    """
    c_in, c_hid = w1.shape
    c_hid2, c_out = w2.shape
    assert c_hid == c_hid2, "w1/w2 hidden dims mismatch"

    c_in_p = _round_up(c_in, _LANE)
    c_hid_p = _round_up(c_hid, _LANE)
    c_out_p = _round_up(c_out, _LANE)

    def pad2(a, rows, cols, dt):
        a = a.astype(dt)
        if a.shape == (rows, cols):            # already aligned -> no extra copy
            return a
        return jnp.zeros((rows, cols), dt).at[:a.shape[0], :a.shape[1]].set(a)

    w1p = pad2(w1, c_in_p, c_hid_p, weight_dtype)
    w2p = pad2(w2, c_hid_p, c_out_p, weight_dtype)
    b1p = pad2(jnp.reshape(b1, (1, -1)), 1, c_hid_p, jnp.float32)
    b2p = pad2(jnp.reshape(b2, (1, -1)), 1, c_out_p, jnp.float32)
    return w1p, b1p, w2p, b2p


# ---------------------------------------------------------------------------
# Tile-config selection
# ---------------------------------------------------------------------------
def _resident_footprint(tm, c_in_p, c_hid_p, c_out_p, out_bytes):
    wb = 2                                            # bf16 operands
    f = 2 * tm * c_in_p * wb                          # x (double-buffered)
    f += 2 * c_in_p * c_hid_p * wb                    # W1
    f += 2 * c_hid_p * c_out_p * wb                   # W2
    f += 2 * 8 * (c_hid_p + c_out_p) * 4              # biases (sublane-padded)
    f += 2 * tm * c_out_p * out_bytes                 # out
    f += tm * c_hid_p * 4                             # h intermediate (f32)
    f += tm * c_out_p * 4                             # f32 result before cast
    return f


def _streamed_footprint(tm, tk, c_in_p, c_out_p, out_bytes, needs_scratch):
    wb = 2
    f = 2 * tm * c_in_p * wb                          # x
    f += 2 * c_in_p * tk * wb                         # W1 k-slice
    f += 2 * tk * c_out_p * wb                        # W2 k-slice
    f += 2 * 8 * (tk + c_out_p) * 4                   # biases
    f += 2 * tm * c_out_p * out_bytes                 # out
    f += tm * tk * 4                                  # h slice (f32)
    f += tm * c_out_p * 4                             # partial product (f32)
    if needs_scratch:
        f += tm * c_out_p * 4                         # scratch accumulator
    return f


def _pick_config(m, c_in_p, c_hid_p, c_out_p, out_bytes, vmem_bytes):
    budget = int(vmem_bytes * 0.70)
    m128 = _round_up(max(m, 1), _LANE)

    cap = m128
    if m128 >= 2 * _LANE:
        # keep >= 2 row tiles so the "parallel" M axis can shard over v7x's 2 TCs
        cap = max(_LANE, (m128 // 2) // _LANE * _LANE)
    tm_cands = sorted({min(c, cap) for c in (1024, 512, 256, 128)}, reverse=True)

    # 1) weights-resident: single hidden tile -> W1/W2 DMA'd once for the kernel
    for tm in tm_cands:
        if _resident_footprint(tm, c_in_p, c_hid_p, c_out_p, out_bytes) <= budget:
            return "resident", tm, c_hid_p

    # 2) hidden-dim streaming: tk evenly divides c_hid_p (no wasted MXU/DMA work)
    n128 = c_hid_p // _LANE
    tk_target = 1024 if vmem_bytes >= (96 << 20) else 512
    num_k = -(-c_hid_p // tk_target)
    while n128 % num_k:
        num_k += 1
    tk = (n128 // num_k) * _LANE
    needs_scratch = out_bytes != 4
    for tm in tm_cands:
        if _streamed_footprint(tm, tk, c_in_p, c_out_p, out_bytes,
                               needs_scratch) <= budget:
            return "streamed", tm, tk

    # Last resort: smallest tiles (always correct; may spill on huge features).
    return "streamed", _LANE, _LANE


# ---------------------------------------------------------------------------
# Forward
# ---------------------------------------------------------------------------
@functools.partial(jax.jit, static_argnames=("c_out", "force_mode", "force_tk"))
def mlp_forward(x, w1p, b1p, w2p, b2p, *, c_out, force_mode=None, force_tk=None):
    """y = fc2(ReLU(fc1(x))); dropout p=0.0 (module default) is identity.

    Expects weights already prepared by prepare_mlp_params (padded + bf16).
    `force_mode` / `force_tk` are test-only overrides of the auto tiling.
    """
    orig_shape = x.shape
    c_in = orig_shape[-1]
    c_in_p, c_hid_p = w1p.shape
    c_out_p = w2p.shape[1]

    x2d = x.reshape(-1, c_in)
    m = x2d.shape[0]
    out_dtype = x.dtype
    out_bytes = jnp.dtype(out_dtype).itemsize

    vmem_bytes = _physical_vmem_bytes()
    mode, tm, tk = _pick_config(m, c_in_p, c_hid_p, c_out_p, out_bytes, vmem_bytes)
    if force_mode is not None:
        mode = force_mode
        if mode == "resident":
            tk = c_hid_p
    if force_tk is not None:
        tk = force_tk

    m_pad = _round_up(m, tm)
    # Per-call activation padding; skipped when already aligned.
    if m_pad == m and c_in_p == c_in:
        xp = x2d.astype(jnp.bfloat16)
    else:
        xp = jnp.zeros((m_pad, c_in_p), jnp.bfloat16).at[:m, :c_in].set(
            x2d.astype(jnp.bfloat16))

    grid_m = m_pad // tm
    num_k = c_hid_p // tk

    flops = 2 * m_pad * (c_in_p * c_hid_p + c_hid_p * c_out_p)
    bytes_accessed = (xp.size * 2 + w1p.size * 2 + w2p.size * 2
                      + b1p.size * 4 + b2p.size * 4 + m_pad * c_out_p * out_bytes)
    cost = pl.CostEstimate(flops=flops, transcendentals=0,
                           bytes_accessed=bytes_accessed)

    if mode == "resident":
        footprint = _resident_footprint(tm, c_in_p, c_hid_p, c_out_p, out_bytes)
        out = pl.pallas_call(
            _mlp_kernel_resident,
            out_shape=jax.ShapeDtypeStruct((m_pad, c_out_p), out_dtype),
            grid_spec=pltpu.PrefetchScalarGridSpec(
                num_scalar_prefetch=0,
                grid=(grid_m,),
                in_specs=[
                    pl.BlockSpec((tm, c_in_p), lambda i: (i, 0)),       # x row tile
                    pl.BlockSpec((c_in_p, c_hid_p), lambda i: (0, 0)),  # W1 (resident)
                    pl.BlockSpec((1, c_hid_p), lambda i: (0, 0)),       # b1
                    pl.BlockSpec((c_hid_p, c_out_p), lambda i: (0, 0)), # W2 (resident)
                    pl.BlockSpec((1, c_out_p), lambda i: (0, 0)),       # b2
                ],
                out_specs=pl.BlockSpec((tm, c_out_p), lambda i: (i, 0)),
            ),
            compiler_params=pltpu.CompilerParams(
                dimension_semantics=("parallel",),
                vmem_limit_bytes=_vmem_limit(footprint, vmem_bytes),
            ),
            cost_estimate=cost,
        )(xp, w1p, b1p, w2p, b2p)
    else:
        needs_scratch = jnp.dtype(out_dtype) != jnp.dtype(jnp.float32)
        kernel = (_mlp_kernel_kstream_scratch if needs_scratch
                  else _mlp_kernel_kstream_accout)
        scratch = ([pltpu.VMEM((tm, c_out_p), jnp.float32)]
                   if needs_scratch else [])
        footprint = _streamed_footprint(tm, tk, c_in_p, c_out_p, out_bytes,
                                        needs_scratch)
        out = pl.pallas_call(
            kernel,
            out_shape=jax.ShapeDtypeStruct((m_pad, c_out_p), out_dtype),
            grid_spec=pltpu.PrefetchScalarGridSpec(
                num_scalar_prefetch=0,
                grid=(grid_m, num_k),
                in_specs=[
                    pl.BlockSpec((tm, c_in_p), lambda i, k: (i, 0)),    # x row tile
                    pl.BlockSpec((c_in_p, tk), lambda i, k: (0, k)),    # W1 k-slice
                    pl.BlockSpec((1, tk), lambda i, k: (0, k)),         # b1 k-slice
                    pl.BlockSpec((tk, c_out_p), lambda i, k: (k, 0)),   # W2 k-slice
                    pl.BlockSpec((1, c_out_p), lambda i, k: (0, 0)),    # b2
                ],
                out_specs=pl.BlockSpec((tm, c_out_p), lambda i, k: (i, 0)),
                scratch_shapes=scratch,
            ),
            compiler_params=pltpu.CompilerParams(
                dimension_semantics=("parallel", "arbitrary"),
                vmem_limit_bytes=_vmem_limit(footprint, vmem_bytes),
            ),
            cost_estimate=cost,
        )(xp, w1p, b1p, w2p, b2p)

    return out[:m, :c_out].reshape(*orig_shape[:-1], c_out)


# ---------------------------------------------------------------------------
# Init / reference / test
# ---------------------------------------------------------------------------
def init_mlp_params(key, in_features, hidden_features=None, out_features=None,
                    dtype=jnp.float32):
    """Deterministic init matching nn.Linear shapes (weights pre-transposed)."""
    out_features = out_features or in_features
    hidden_features = hidden_features or in_features
    k1, k2, k3, k4 = jax.random.split(key, 4)
    lim1 = 1.0 / (in_features ** 0.5)
    lim2 = 1.0 / (hidden_features ** 0.5)
    w1 = jax.random.uniform(k1, (in_features, hidden_features), dtype, -lim1, lim1)
    b1 = jax.random.uniform(k2, (hidden_features,), dtype, -lim1, lim1)
    w2 = jax.random.uniform(k3, (hidden_features, out_features), dtype, -lim2, lim2)
    b2 = jax.random.uniform(k4, (out_features,), dtype, -lim2, lim2)
    return w1, b1, w2, b2


def _reference(x, w1, b1, w2, b2):
    """Mirror of the kernel math: bf16 MXU operands, f32 accumulation."""
    x2 = x.reshape(-1, w1.shape[0])
    h = jnp.dot(x2.astype(jnp.bfloat16), w1.astype(jnp.bfloat16),
                preferred_element_type=jnp.float32) + b1.astype(jnp.float32)
    h = jnp.maximum(h, 0.0)
    y = jnp.dot(h.astype(jnp.bfloat16), w2.astype(jnp.bfloat16),
                preferred_element_type=jnp.float32) + b2.astype(jnp.float32)
    return y.reshape(*x.shape[:-1], w2.shape[1])


if __name__ == "__main__":
    key = jax.random.PRNGKey(0)
    kx, kp = jax.random.split(key)

    # ---- Test 1: small MLP, f32, auto config (weights-resident path) --------
    batch, seq, c_in, c_hid, c_out = 2, 8, 32, 64, 32
    x = jax.random.normal(kx, (batch, seq, c_in), dtype=jnp.float32)
    w1, b1, w2, b2 = init_mlp_params(kp, c_in, c_hid, c_out)
    params = prepare_mlp_params(w1, b1, w2, b2)        # one-time prep (hoisted)

    y = jax.block_until_ready(mlp_forward(x, *params, c_out=c_out))
    assert y.shape == (batch, seq, c_out)
    y_ref = _reference(x, w1, b1, w2, b2)
    assert jnp.allclose(y, y_ref, atol=2e-3, rtol=2e-3), \
        float(jnp.max(jnp.abs(y - y_ref)))

    # Loose sanity check vs. pure-f32 torch math (bf16 operand quantization).
    f32_ref = (jnp.maximum(x.reshape(-1, c_in) @ w1 + b1, 0.0) @ w2 + b2
               ).reshape(batch, seq, c_out)
    assert jnp.allclose(y, f32_ref, atol=5e-2, rtol=5e-2)

    # ---- Test 2: forced hidden-dim streaming, f32 output accumulated in o_ref
    c_hid2 = 256
    w1b, b1b, w2b, b2b = init_mlp_params(jax.random.PRNGKey(1), c_in, c_hid2, c_out)
    params2 = prepare_mlp_params(w1b, b1b, w2b, b2b)
    y2 = jax.block_until_ready(
        mlp_forward(x, *params2, c_out=c_out, force_mode="streamed", force_tk=128))
    y2_ref = _reference(x, w1b, b1b, w2b, b2b)
    assert jnp.allclose(y2, y2_ref, atol=2e-3, rtol=2e-3), \
        float(jnp.max(jnp.abs(y2 - y2_ref)))

    # ---- Test 3: bf16 activations/output -> scratch-accumulator streamed path
    y3 = jax.block_until_ready(
        mlp_forward(x.astype(jnp.bfloat16), *params2, c_out=c_out,
                    force_mode="streamed", force_tk=128))
    assert y3.dtype == jnp.bfloat16
    assert jnp.allclose(y3.astype(jnp.float32), y2_ref, atol=5e-2, rtol=5e-2)

    print("KERNEL_OK")
</pallas_src>

<mosaic_0001>
module attributes {stable_mosaic.version = 11 : i64} {
  func.func @_mlp_kernel_resident(%arg0: i32, %arg1: memref<128x128xbf16, #tpu.memory_space<vmem>>, %arg2: memref<128x128xbf16, #tpu.memory_space<vmem>>, %arg3: memref<1x128xf32, #tpu.memory_space<vmem>>, %arg4: memref<128x128xbf16, #tpu.memory_space<vmem>>, %arg5: memref<1x128xf32, #tpu.memory_space<vmem>>, %arg6: memref<128x128xf32, #tpu.memory_space<vmem>>) attributes {dimension_semantics = [#tpu.dimension_semantics<parallel>], iteration_bounds = array<i64: 1>, scalar_prefetch = 0 : i64, scratch_operands = 0 : i64, tpu.core_type = #tpu.core_type<tc>, window_params = [{transform_indices = @transform_0, window_bounds = array<i64: 128, 128>}, {pipeline_mode = #tpu.pipeline_mode<synchronous>, transform_indices = @transform_1, window_bounds = array<i64: 128, 128>}, {pipeline_mode = #tpu.pipeline_mode<synchronous>, transform_indices = @transform_2, window_bounds = array<i64: 1, 128>}, {pipeline_mode = #tpu.pipeline_mode<synchronous>, transform_indices = @transform_3, window_bounds = array<i64: 128, 128>}, {pipeline_mode = #tpu.pipeline_mode<synchronous>, transform_indices = @transform_4, window_bounds = array<i64: 1, 128>}, {transform_indices = @transform_5, window_bounds = array<i64: 128, 128>}]} {
    %c0 = arith.constant 0 : index
    %c0_0 = arith.constant 0 : index
    %0 = vector.load %arg1[%c0, %c0_0] : memref<128x128xbf16, #tpu.memory_space<vmem>>, vector<128x128xbf16>
    %c0_1 = arith.constant 0 : index
    %c0_2 = arith.constant 0 : index
    %1 = vector.load %arg2[%c0_1, %c0_2] : memref<128x128xbf16, #tpu.memory_space<vmem>>, vector<128x128xbf16>
    %cst = arith.constant dense<0.000000e+00> : vector<128x128xf32>
    %2 = tpu.matmul %0, %1, %cst {dimension_numbers = #tpu.dot_dimension_numbers<[1], [0], [0], [1], [0, 0, 1, 1], [], []>} : vector<128x128xbf16>, vector<128x128xbf16>, vector<128x128xf32> -> vector<128x128xf32>
    %c0_3 = arith.constant 0 : index
    %c0_4 = arith.constant 0 : index
    %3 = vector.load %arg3[%c0_3, %c0_4] : memref<1x128xf32, #tpu.memory_space<vmem>>, vector<1x128xf32>
    %4 = vector.broadcast %3 : vector<1x128xf32> to vector<128x128xf32>
    %5 = arith.addf %2, %4 : vector<128x128xf32>
    %cst_5 = arith.constant 0.000000e+00 : f32
    %6 = vector.broadcast %cst_5 : f32 to vector<128x128xf32>
    %7 = arith.maximumf %5, %6 : vector<128x128xf32>
    %8 = arith.truncf %7 : vector<128x128xf32> to vector<128x128xbf16>
    %c0_6 = arith.constant 0 : index
    %c0_7 = arith.constant 0 : index
    %9 = vector.load %arg4[%c0_6, %c0_7] : memref<128x128xbf16, #tpu.memory_space<vmem>>, vector<128x128xbf16>
    %cst_8 = arith.constant dense<0.000000e+00> : vector<128x128xf32>
    %10 = tpu.matmul %8, %9, %cst_8 {dimension_numbers = #tpu.dot_dimension_numbers<[1], [0], [0], [1], [0, 0, 1, 1], [], []>} : vector<128x128xbf16>, vector<128x128xbf16>, vector<128x128xf32> -> vector<128x128xf32>
    %c0_9 = arith.constant 0 : index
    %c0_10 = arith.constant 0 : index
    %11 = vector.load %arg5[%c0_9, %c0_10] : memref<1x128xf32, #tpu.memory_space<vmem>>, vector<1x128xf32>
    %12 = vector.broadcast %11 : vector<1x128xf32> to vector<128x128xf32>
    %13 = arith.addf %10, %12 : vector<128x128xf32>
    %c0_11 = arith.constant 0 : index
    %c0_12 = arith.constant 0 : index
    %14 = vector.load %arg6[%c0_11, %c0_12] : memref<128x128xf32, #tpu.memory_space<vmem>>, vector<128x128xf32>
    tpu.vector_store %arg6[%c0_11, %c0_12], %13 {strides = array<i32>} : memref<128x128xf32, #tpu.memory_space<vmem>>, vector<128x128xf32>,
    return
  }
  func.func @transform_0(%arg0: i32) -> (i32, i32) {
    %c0_i32 = arith.constant 0 : i32
    %c0_i32_0 = arith.constant 0 : i32
    return %arg0, %c0_i32 : i32, i32
  }
  func.func @transform_1(%arg0: i32) -> (i32, i32) {
    %c0_i32 = arith.constant 0 : i32
    %c0_i32_0 = arith.constant 0 : i32
    %c0_i32_1 = arith.constant 0 : i32
    return %c0_i32, %c0_i32_0 : i32, i32
  }
  func.func @transform_2(%arg0: i32) -> (i32, i32) {
    %c0_i32 = arith.constant 0 : i32
    %c0_i32_0 = arith.constant 0 : i32
    %c0_i32_1 = arith.constant 0 : i32
    return %c0_i32, %c0_i32_0 : i32, i32
  }
  func.func @transform_3(%arg0: i32) -> (i32, i32) {
    %c0_i32 = arith.constant 0 : i32
    %c0_i32_0 = arith.constant 0 : i32
    %c0_i32_1 = arith.constant 0 : i32
    return %c0_i32, %c0_i32_0 : i32, i32
  }
  func.func @transform_4(%arg0: i32) -> (i32, i32) {
    %c0_i32 = arith.constant 0 : i32
    %c0_i32_0 = arith.constant 0 : i32
    %c0_i32_1 = arith.constant 0 : i32
    return %c0_i32, %c0_i32_0 : i32, i32
  }
  func.func @transform_5(%arg0: i32) -> (i32, i32) {
    %c0_i32 = arith.constant 0 : i32
    %c0_i32_0 = arith.constant 0 : i32
    return %arg0, %c0_i32 : i32, i32
  }
}

</mosaic_0001>

<llo_original>
// kernel: mlp_forward.1
$region0: #{mlp_forward.1}
  #allocation0 [shape = 'u32[]', space=smem, size = 0x4, offset = 0x4, fixed_abs, tag = 'smem constant byte address 0x4 - core index']
  #allocation1 [shape = 'u32[72,128]{1,0:T(1,128)}', space=vmem, size = 0x9000, scoped, tag = 'internal scratch']
  %s0 = inlined_call_operand.vmem [shape: bf16[128,128], index: 0, kind: input, shape index: {}]
  %s1 = inlined_call_operand.vmem [shape: bf16[128,128], index: 1, kind: input, shape index: {}]
  %s2 = inlined_call_operand.vmem [shape: f32[1,128], index: 2, kind: input, shape index: {}]
  %s3 = inlined_call_operand.hbm [shape: bf16[128,128], index: 3, kind: input, shape index: {}]
  %s4 = inlined_call_operand.vmem [shape: f32[1,128], index: 4, kind: input, shape index: {}]
  %s5 = inlined_call_operand.vmem [shape: f32[128,128], index: 5, kind: output, shape index: {}]
  %s6 = sld [smem:[#allocation0]]
  $region34: #{mlp_forward.1} parent=0
    _
  %s8 = ssub.s32 1, %s6
  %s9 = scalar_select 0, %s8, %s6
  $region1: #{mlp_forward.1} parent=0
    #allocation2 [shape = 'u8[32768]{0}', space=vmem, size = 0x8000, scoped, tag = 'input window, operand 3, single buffered']
    #allocation3 [shape = 's32[1]{0}', space=sflag, size = 0x4, scoped, tag = 'scoped memory for mlp_forward.1']
    %10 = vsyncpa [#allocation3], 0
    // Predicated region
    $region2: #{mlp_forward.1} parent=1 // pred_check
      _
    $region3: #{mlp_forward.1} parent=1 // pred_check_branch
      %12 = sbr.rel (0) target = $region5
    $region4: #{mlp_forward.1} parent=1 // pred_region
      _
    $region5: #{mlp_forward.1} parent=1 // pred_fallthru
      _
    // Predicated region
    $region6: #{mlp_forward.1} parent=1 // pred_check
      _
    $region7: #{mlp_forward.1} parent=1 // pred_check_branch
      %14 = sbr.rel (0) target = $region9
    $region8: #{mlp_forward.1} parent=1 // pred_region
      _
    $region9: #{mlp_forward.1} parent=1 // pred_fallthru
      _
    // Predicated region
    $region10: #{mlp_forward.1} parent=1 // pred_check
      _
    $region11: #{mlp_forward.1} parent=1 // pred_check_branch
      %16 = sbr.rel (0) target = $region13
    $region12: #{mlp_forward.1} parent=1 // pred_region
      _
    $region13: #{mlp_forward.1} parent=1 // pred_fallthru
      _
    // Predicated region
    $region14: #{mlp_forward.1} parent=1 // pred_check
      _
    $region15: #{mlp_forward.1} parent=1 // pred_check_branch
      %18 = sbr.rel (0) target = $region17
    $region16: #{mlp_forward.1} parent=1 // pred_region
      %20 = vsyncadd [#allocation3], 0
      %s21 = sshll.u32 %s3, 4
      %s22 = int_to_ptr.hbm [resolvable:$true] %s21
      %s23 = sshll.u32 [#allocation2], 4
      %s24 = int_to_ptr.vmem [resolvable:$true] %s23
      %29 = dma.hbm_to_vmem [thread:$0]  %s22, 1024, %s24, [#allocation3], 64, 64, 4
    $region17: #{mlp_forward.1} parent=1 // pred_fallthru
      _
    // Predicated region
    $region18: #{mlp_forward.1} parent=1 // pred_check
      _
    $region19: #{mlp_forward.1} parent=1 // pred_check_branch
      %31 = sbr.rel (0) target = $region21
    $region20: #{mlp_forward.1} parent=1 // pred_region
      _
    $region21: #{mlp_forward.1} parent=1 // pred_fallthru
      _
    // Predicated region
    $region22: #{mlp_forward.1} parent=1 // pred_check
      _
    $region23: #{mlp_forward.1} parent=1 // pred_check_branch
      %33 = sbr.rel (0) target = $region25
    $region24: #{mlp_forward.1} parent=1 // pred_region
      %35 = dma.done [#allocation3], 1024
    $region25: #{mlp_forward.1} parent=1 // pred_fallthru
      _
    %v36 = vld [vmem:[%s0] sm:$0xf]
    %v37 = vld [vmem:[%s0 + $0x4] sm:$0xf]
    %v38 = vld [vmem:[%s0 + $0x8] sm:$0xf]
    %v39 = vld [vmem:[%s0 + $0xc] sm:$0xf]
    %v40 = vld [vmem:[%s0 + $0x10] sm:$0xf]
    %v41 = vld [vmem:[%s0 + $0x14] sm:$0xf]
    %v42 = vld [vmem:[%s0 + $0x18] sm:$0xf]
    %v43 = vld [vmem:[%s0 + $0x1c] sm:$0xf]
    %v44 = vld [vmem:[%s0 + $0x20] sm:$0xf]
    %v45 = vld [vmem:[%s0 + $0x24] sm:$0xf]
    %v46 = vld [vmem:[%s0 + $0x28] sm:$0xf]
    %v47 = vld [vmem:[%s0 + $0x2c] sm:$0xf]
    %v48 = vld [vmem:[%s0 + $0x30] sm:$0xf]
    %v49 = vld [vmem:[%s0 + $0x34] sm:$0xf]
    %v50 = vld [vmem:[%s0 + $0x38] sm:$0xf]
    %v51 = vld [vmem:[%s0 + $0x3c] sm:$0xf]
    %v52 = vld [vmem:[%s1] sm:$0xf]
    %v53 = vld [vmem:[%s1 + $0x4] sm:$0xf]
    %v54 = vld [vmem:[%s1 + $0x8] sm:$0xf]
    %v55 = vld [vmem:[%s1 + $0xc] sm:$0xf]
    %v56 = vld [vmem:[%s1 + $0x10] sm:$0xf]
    %v57 = vld [vmem:[%s1 + $0x14] sm:$0xf]
    %v58 = vld [vmem:[%s1 + $0x18] sm:$0xf]
    %v59 = vld [vmem:[%s1 + $0x1c] sm:$0xf]
    %v60 = vld [vmem:[%s1 + $0x20] sm:$0xf]
    %v61 = vld [vmem:[%s1 + $0x24] sm:$0xf]
    %v62 = vld [vmem:[%s1 + $0x28] sm:$0xf]
    %v63 = vld [vmem:[%s1 + $0x2c] sm:$0xf]
    %v64 = vld [vmem:[%s1 + $0x30] sm:$0xf]
    %v65 = vld [vmem:[%s1 + $0x34] sm:$0xf]
    %v66 = vld [vmem:[%s1 + $0x38] sm:$0xf]
    %v67 = vld [vmem:[%s1 + $0x3c] sm:$0xf]
    %v68 = vld [vmem:[%s2] sm:$0x1]
    %v70 = vperm.slane %v68, 0
    %v88 = vunpack.c.l.b16 %v36
    %v89 = vunpack.c.l.b16 %v37
    %v90 = vunpack.c.l.b16 %v38
    %v91 = vunpack.c.l.b16 %v39
    %v92 = vunpack.c.l.b16 %v40
    %v93 = vunpack.c.l.b16 %v41
    %v94 = vunpack.c.l.b16 %v42
    %v95 = vunpack.c.l.b16 %v43
    %v96 = vunpack.c.l.b16 %v44
    %v97 = vunpack.c.l.b16 %v45
    %v98 = vunpack.c.l.b16 %v46
    %v99 = vunpack.c.l.b16 %v47
    %v100 = vunpack.c.l.b16 %v48
    %v101 = vunpack.c.l.b16 %v49
    %v102 = vunpack.c.l.b16 %v50
    %v103 = vunpack.c.l.b16 %v51
    %v104 = vpack.c.b16 %v89, %v88
    %v105 = vpack.c.b16 %v91, %v90
    %v106 = vpack.c.b16 %v93, %v92
    %v107 = vpack.c.b16 %v95, %v94
    %v108 = vpack.c.b16 %v97, %v96
    %v109 = vpack.c.b16 %v99, %v98
    %v110 = vpack.c.b16 %v101, %v100
    %v111 = vpack.c.b16 %v103, %v102
    %v136 = vunpack.c.l.b16 %v52
    %v137 = vunpack.c.l.b16 %v53
    %v138 = vunpack.c.l.b16 %v54
    %v139 = vunpack.c.l.b16 %v55
    %v140 = vunpack.c.l.b16 %v56
    %v141 = vunpack.c.l.b16 %v57
    %v142 = vunpack.c.l.b16 %v58
    %v143 = vunpack.c.l.b16 %v59
    %v144 = vunpack.c.l.b16 %v60
    %v145 = vunpack.c.l.b16 %v61
    %v146 = vunpack.c.l.b16 %v62
    %v147 = vunpack.c.l.b16 %v63
    %v148 = vunpack.c.l.b16 %v64
    %v149 = vunpack.c.l.b16 %v65
    %v150 = vunpack.c.l.b16 %v66
    %v151 = vunpack.c.l.b16 %v67
    %v152 = vpack.c.b16 %v137, %v136
    %v153 = vpack.c.b16 %v139, %v138
    %v154 = vpack.c.b16 %v141, %v140
    %v155 = vpack.c.b16 %v143, %v142
    %v156 = vpack.c.b16 %v145, %v144
    %v157 = vpack.c.b16 %v147, %v146
    %v158 = vpack.c.b16 %v149, %v148
    %v159 = vpack.c.b16 %v151, %v150
    %168 = vmatpush.bf16.msra.mxu0 %v159
    %169 = vmatpush.bf16.msra.mxu0 %v158
    %170 = vmatpush.bf16.msra.mxu0 %v157
    %171 = vmatpush.bf16.msra.mxu0 %v156
    %172 = vmatpush.bf16.msra.mxu0 %v155
    %173 = vmatpush.bf16.msra.mxu0 %v154
    %174 = vmatpush.bf16.msra.mxu0 %v153
    %175 = vmatpush.bf16.msra.mxu0 %v152
    %176 = vmatmul.bf16.gmra.mxu0 %v104
    %v177 = vpop.f32.mrf.mxu0
    %v178 = vadd.f32 %v70, %v177
    %v179 = vpop.f32.mrf.mxu0
    %v180 = vadd.f32 %v70, %v179
    %181 = vmatmul.bf16.gmra.mxu0 %v105
    %v182 = vpop.f32.mrf.mxu0
    %v183 = vadd.f32 %v70, %v182
    %v184 = vpop.f32.mrf.mxu0
    %v185 = vadd.f32 %v70, %v184
    %186 = vmatmul.bf16.gmra.mxu0 %v106
    %v187 = vpop.f32.mrf.mxu0
    %v188 = vadd.f32 %v70, %v187
    %v189 = vpop.f32.mrf.mxu0
    %v190 = vadd.f32 %v70, %v189
    %191 = vmatmul.bf16.gmra.mxu0 %v107
    %v192 = vpop.f32.mrf.mxu0
    %v193 = vadd.f32 %v70, %v192
    %v194 = vpop.f32.mrf.mxu0
    %v195 = vadd.f32 %v70, %v194
    %196 = vmatmul.bf16.gmra.mxu0 %v108
    %v197 = vpop.f32.mrf.mxu0
    %v198 = vadd.f32 %v70, %v197
    %v199 = vpop.f32.mrf.mxu0
    %v200 = vadd.f32 %v70, %v199
    %201 = vmatmul.bf16.gmra.mxu0 %v109
    %v202 = vpop.f32.mrf.mxu0
    %v203 = vadd.f32 %v70, %v202
    %v204 = vpop.f32.mrf.mxu0
    %v205 = vadd.f32 %v70, %v204
    %206 = vmatmul.bf16.gmra.mxu0 %v110
    %v207 = vpop.f32.mrf.mxu0
    %v208 = vadd.f32 %v70, %v207
    %v209 = vpop.f32.mrf.mxu0
    %v210 = vadd.f32 %v70, %v209
    %211 = vmatmul.bf16.gmra.mxu0 %v111
    %v212 = vpop.f32.mrf.mxu0
    %v213 = vadd.f32 %v70, %v212
    %v214 = vpop.f32.mrf.mxu0
    %v215 = vadd.f32 %v70, %v214
    %216 = vdwg.mxu0
    %v217 = vmax.f32 %v178, 0.0
    %v218 = vmax.f32 %v180, 0.0
    %v219 = vmax.f32 %v183, 0.0
    %v220 = vmax.f32 %v185, 0.0
    %v221 = vmax.f32 %v188, 0.0
    %v222 = vmax.f32 %v190, 0.0
    %v223 = vmax.f32 %v193, 0.0
    %v224 = vmax.f32 %v195, 0.0
    %v225 = vmax.f32 %v198, 0.0
    %v226 = vmax.f32 %v200, 0.0
    %v227 = vmax.f32 %v203, 0.0
    %v228 = vmax.f32 %v205, 0.0
    %v229 = vmax.f32 %v208, 0.0
    %v230 = vmax.f32 %v210, 0.0
    %v231 = vmax.f32 %v213, 0.0
    %v232 = vmax.f32 %v215, 0.0
    %v233 = vpack.c.bf16 %v218, %v217
    %v234 = vpack.c.bf16 %v220, %v219
    %v235 = vpack.c.bf16 %v222, %v221
    %v236 = vpack.c.bf16 %v224, %v223
    %v237 = vpack.c.bf16 %v226, %v225
    %v238 = vpack.c.bf16 %v228, %v227
    %v239 = vpack.c.bf16 %v230, %v229
    %v240 = vpack.c.bf16 %v232, %v231
    %v241 = vld [vmem:[#allocation2] sm:$0xf]
    %v242 = vld [vmem:[#allocation2 + $0x4] sm:$0xf]
    %v243 = vld [vmem:[#allocation2 + $0x8] sm:$0xf]
    %v244 = vld [vmem:[#allocation2 + $0xc] sm:$0xf]
    %v245 = vld [vmem:[#allocation2 + $0x10] sm:$0xf]
    %v246 = vld [vmem:[#allocation2 + $0x14] sm:$0xf]
    %v247 = vld [vmem:[#allocation2 + $0x18] sm:$0xf]
    %v248 = vld [vmem:[#allocation2 + $0x1c] sm:$0xf]
    %v249 = vld [vmem:[#allocation2 + $0x20] sm:$0xf]
    %v250 = vld [vmem:[#allocation2 + $0x24] sm:$0xf]
    %v251 = vld [vmem:[#allocation2 + $0x28] sm:$0xf]
    %v252 = vld [vmem:[#allocation2 + $0x2c] sm:$0xf]
    %v253 = vld [vmem:[#allocation2 + $0x30] sm:$0xf]
    %v254 = vld [vmem:[#allocation2 + $0x34] sm:$0xf]
    %v255 = vld [vmem:[#allocation2 + $0x38] sm:$0xf]
    %v256 = vld [vmem:[#allocation2 + $0x3c] sm:$0xf]
    %v257 = vld [vmem:[%s4] sm:$0x1]
    %v259 = vperm.slane %v257, 0
    %v277 = vunpack.c.l.b16 %v241
    %v278 = vunpack.c.l.b16 %v242
    %v279 = vunpack.c.l.b16 %v243
    %v280 = vunpack.c.l.b16 %v244
    %v281 = vunpack.c.l.b16 %v245
    %v282 = vunpack.c.l.b16 %v246
    %v283 = vunpack.c.l.b16 %v247
    %v284 = vunpack.c.l.b16 %v248
    %v285 = vunpack.c.l.b16 %v249
    %v286 = vunpack.c.l.b16 %v250
    %v287 = vunpack.c.l.b16 %v251
    %v288 = vunpack.c.l.b16 %v252
    %v289 = vunpack.c.l.b16 %v253
    %v290 = vunpack.c.l.b16 %v254
    %v291 = vunpack.c.l.b16 %v255
    %v292 = vunpack.c.l.b16 %v256
    %v293 = vpack.c.b16 %v278, %v277
    %v294 = vpack.c.b16 %v280, %v279
    %v295 = vpack.c.b16 %v282, %v281
    %v296 = vpack.c.b16 %v284, %v283
    %v297 = vpack.c.b16 %v286, %v285
    %v298 = vpack.c.b16 %v288, %v287
    %v299 = vpack.c.b16 %v290, %v289
    %v300 = vpack.c.b16 %v292, %v291
    %309 = vmatpush.bf16.msra.mxu0 %v300
    %310 = vmatpush.bf16.msra.mxu0 %v299
    %311 = vmatpush.bf16.msra.mxu0 %v298
    %312 = vmatpush.bf16.msra.mxu0 %v297
    %313 = vmatpush.bf16.msra.mxu0 %v296
    %314 = vmatpush.bf16.msra.mxu0 %v295
    %315 = vmatpush.bf16.msra.mxu0 %v294
    %316 = vmatpush.bf16.msra.mxu0 %v293
    %317 = vmatmul.bf16.gmra.mxu0 %v233
    %v318 = vpop.f32.mrf.mxu0
    %v319 = vadd.f32 %v259, %v318
    %v320 = vpop.f32.mrf.mxu0
    %v321 = vadd.f32 %v259, %v320
    %322 = vmatmul.bf16.gmra.mxu0 %v234
    %v323 = vpop.f32.mrf.mxu0
    %v324 = vadd.f32 %v259, %v323
    %v325 = vpop.f32.mrf.mxu0
    %v326 = vadd.f32 %v259, %v325
    %327 = vmatmul.bf16.gmra.mxu0 %v235
    %v328 = vpop.f32.mrf.mxu0
    %v329 = vadd.f32 %v259, %v328
    %v330 = vpop.f32.mrf.mxu0
    %v331 = vadd.f32 %v259, %v330
    %332 = vmatmul.bf16.gmra.mxu0 %v236
    %v333 = vpop.f32.mrf.mxu0
    %v334 = vadd.f32 %v259, %v333
    %v335 = vpop.f32.mrf.mxu0
    %v336 = vadd.f32 %v259, %v335
    %337 = vmatmul.bf16.gmra.mxu0 %v237
    %v338 = vpop.f32.mrf.mxu0
    %v339 = vadd.f32 %v259, %v338
    %v340 = vpop.f32.mrf.mxu0
    %v341 = vadd.f32 %v259, %v340
    %342 = vmatmul.bf16.gmra.mxu0 %v238
    %v343 = vpop.f32.mrf.mxu0
    %v344 = vadd.f32 %v259, %v343
    %v345 = vpop.f32.mrf.mxu0
    %v346 = vadd.f32 %v259, %v345
    %347 = vmatmul.bf16.gmra.mxu0 %v239
    %v348 = vpop.f32.mrf.mxu0
    %v349 = vadd.f32 %v259, %v348
    %v350 = vpop.f32.mrf.mxu0
    %v351 = vadd.f32 %v259, %v350
    %352 = vmatmul.bf16.gmra.mxu0 %v240
    %v353 = vpop.f32.mrf.mxu0
    %v354 = vadd.f32 %v259, %v353
    %v355 = vpop.f32.mrf.mxu0
    %v356 = vadd.f32 %v259, %v355
    %357 = vdwg.mxu0
    %358 = vst [vmem:[%s5] sm:$0xff] %v319
    %359 = vst [vmem:[%s5 + $0x8] sm:$0xff] %v321
    %360 = vst [vmem:[%s5 + $0x10] sm:$0xff] %v324
    %361 = vst [vmem:[%s5 + $0x18] sm:$0xff] %v326
    %362 = vst [vmem:[%s5 + $0x20] sm:$0xff] %v329
    %363 = vst [vmem:[%s5 + $0x28] sm:$0xff] %v331
    %364 = vst [vmem:[%s5 + $0x30] sm:$0xff] %v334
    %365 = vst [vmem:[%s5 + $0x38] sm:$0xff] %v336
    %366 = vst [vmem:[%s5 + $0x40] sm:$0xff] %v339
    %367 = vst [vmem:[%s5 + $0x48] sm:$0xff] %v341
    %368 = vst [vmem:[%s5 + $0x50] sm:$0xff] %v344
    %369 = vst [vmem:[%s5 + $0x58] sm:$0xff] %v346
    %370 = vst [vmem:[%s5 + $0x60] sm:$0xff] %v349
    %371 = vst [vmem:[%s5 + $0x68] sm:$0xff] %v351
    %372 = vst [vmem:[%s5 + $0x70] sm:$0xff] %v354
    %373 = vst [vmem:[%s5 + $0x78] sm:$0xff] %v356
    // Predicated region
    $region26: #{mlp_forward.1} parent=1 // pred_check
      _
    $region27: #{mlp_forward.1} parent=1 // pred_check_branch
      %375 = sbr.rel (0) target = $region29
    $region28: #{mlp_forward.1} parent=1 // pred_region
      _
    $region29: #{mlp_forward.1} parent=1 // pred_fallthru
      _
    // Predicated region
    $region30: #{mlp_forward.1} parent=1 // pred_check
      _
    $region31: #{mlp_forward.1} parent=1 // pred_check_branch
      %377 = sbr.rel (0) target = $region33
    $region32: #{mlp_forward.1} parent=1 // pred_region
      _
    $region33: #{mlp_forward.1} parent=1 // pred_fallthru
      _
    %378 = vsyncpa [#allocation3], 1

</llo_original>
